<compile_context>
chip_gen: v7x
topology: tpu7x:2x2x1
jax: 0.10.0
libtpu: 0.0.40
codegen_flags: <defaults>
</compile_context>

<pallas_src>
import functools

import jax
import jax.numpy as jnp
from jax.experimental import pallas as pl
from jax.experimental.pallas import tpu as pltpu


def _min_pool_kernel(x_ref, mask_ref, o_ref, *, block_s, seq_len):
    # x_ref:    (TB, TS, TH) activation tile
    # mask_ref: (TB, TS, 1)  int8 mask tile (0 == padded position)
    # o_ref:    (TB, TH)     resident output / min accumulator over the S grid axis
    s = pl.program_id(2)

    x = x_ref[...]
    m = mask_ref[...]
    fill = jnp.asarray(0.0001, dtype=x.dtype)
    masked = jnp.where(m != 0, x, fill)            # VPU select, broadcast over TH

    if seq_len % block_s != 0:
        # Last S block is partial: out-of-bounds rows contain garbage -> force
        # them to dtype-max so they can never win the min.
        pos = jax.lax.broadcasted_iota(jnp.int32, (1, block_s, 1), 1) + s * block_s
        big = jnp.asarray(jnp.finfo(x.dtype).max, dtype=x.dtype)
        masked = jnp.where(pos < seq_len, masked, big)

    tile_min = jnp.min(masked, axis=1)             # XLU reduction over the seq tile

    @pl.when(s == 0)
    def _():
        o_ref[...] = tile_min

    @pl.when(s > 0)
    def _():
        o_ref[...] = jnp.minimum(o_ref[...], tile_min)


def _largest_divisor_tile(dim, quantum, max_tile):
    """Largest t <= max_tile with t % quantum == 0 and dim % t == 0; else dim."""
    if dim % quantum == 0:
        t = min(int(max_tile), dim)
        t -= t % quantum
        while t >= quantum:
            if dim % t == 0:
                return t
            t -= quantum
    return dim


def min_pooling(x, attention_mask, input_ids=None, cfg=None, *, x_block_bytes=None):
    """x: (B, S, H) float, attention_mask: (B, S) int/bool/float -> (B, H).

    input_ids / cfg are accepted for signature parity with the PyTorch module;
    the reference forward pass does not use them.
    """
    del input_ids, cfg
    B, S, H = x.shape
    dtype = x.dtype
    itemsize = jnp.dtype(dtype).itemsize

    # ---- generation-aware budgets ------------------------------------------
    try:
        info = pltpu.get_tpu_info()
        vmem_cap = int(getattr(info, "vmem_capacity_bytes", 64 * 1024 * 1024))
    except Exception:  # pragma: no cover - conservative fallback (v7x: 64 MiB/TC)
        vmem_cap = 64 * 1024 * 1024
    if x_block_bytes is None:
        # ~16 MiB/buffer on v7x, ~32 MiB/buffer on v5e/v6e (double-buffered).
        x_block_bytes = vmem_cap // 4
    x_block_bytes = int(min(max(x_block_bytes, 64 * 1024), (vmem_cap * 3) // 8))

    # dtype-aware sublane quantum (f32: 8, bf16: 16, int8/fp8: 32).
    sub_q = max(8, 32 // itemsize)
    lane_q = 128

    # ---- batch tile ----------------------------------------------------------
    # Keep TB small and sublane-dense; pad huge odd batches instead of tb = B.
    pad_b = 0
    if B % 8 != 0 and B > 256:
        pad_b = (-B) % 8
        x = jnp.pad(x, ((0, pad_b), (0, 0), (0, 0)))
        attention_mask = jnp.pad(attention_mask, ((0, pad_b), (0, 0)))
    Bp = B + pad_b
    if Bp % sub_q == 0:
        tb = sub_q
    elif Bp % 8 == 0:
        tb = 8
    else:
        tb = Bp                       # small, non-multiple-of-8 batch: full-B blocks

    # ---- hidden tile: prefer full H (contiguous rows, no per-h mask refetch) --
    if H % lane_q != 0 or tb * 8 * H * itemsize <= x_block_bytes:
        th = H
    else:
        max_th = max(lane_q, (x_block_bytes // (tb * 8 * itemsize)) // lane_q * lane_q)
        th = _largest_divisor_tile(H, lane_q, max_th)
    # Guarantee >= 2 blocks on a parallel axis so both v7x TensorCores get work
    # (harmless on v5e/v6e: TS doubles below, so total step count is unchanged).
    if (Bp // tb) * (H // th) < 2 and th % 256 == 0:
        th //= 2

    # ---- sequence tile (reduction axis, innermost) ---------------------------
    budget_ts = x_block_bytes // max(1, tb * th * itemsize)
    if S <= budget_ts:
        ts = S                                    # full-dim block, always legal
    else:
        ts = max(sub_q, (budget_ts // sub_q) * sub_q)
        ts = max(8, min(ts, S))
    n_s = pl.cdiv(S, ts)                          # partial tail handled in-kernel

    grid = (Bp // tb, H // th, n_s)

    # Narrow int8 mask; compare/select stays in the kernel so x is read from HBM
    # exactly once (no pre-masking pass in the wrapper).
    mask3 = (attention_mask != 0).astype(jnp.int8).reshape(Bp, S, 1)

    kernel = functools.partial(_min_pool_kernel, block_s=ts, seq_len=S)

    # Derive the scoped-VMEM limit from the actual (double-buffered) footprint.
    x_blk = tb * ts * th * itemsize
    mask_blk = tb * ((ts + 31) // 32 * 32) * 128          # int8, lane/sublane padded
    out_blk = tb * th * itemsize
    footprint = 2 * (x_blk + mask_blk + out_blk) + (2 << 20)
    vmem_limit = int(min(max(footprint, 16 << 20), (vmem_cap * 7) // 8))

    out = pl.pallas_call(
        kernel,
        out_shape=jax.ShapeDtypeStruct((Bp, H), dtype),
        grid_spec=pltpu.PrefetchScalarGridSpec(
            num_scalar_prefetch=0,
            grid=grid,
            in_specs=[
                pl.BlockSpec((tb, ts, th), lambda b, h, s: (b, s, h)),
                pl.BlockSpec((tb, ts, 1), lambda b, h, s: (b, s, 0)),
            ],
            out_specs=pl.BlockSpec((tb, th), lambda b, h, s: (b, h)),
        ),
        compiler_params=pltpu.CompilerParams(
            dimension_semantics=("parallel", "parallel", "arbitrary"),
            vmem_limit_bytes=vmem_limit,
        ),
    )(x, mask3)
    return out[:B] if pad_b else out


if __name__ == "__main__":
    key = jax.random.PRNGKey(0)
    k1, k2, k3 = jax.random.split(key, 3)

    def reference(xr, mr):
        fill = jnp.asarray(0.0001, xr.dtype)
        return jnp.min(jnp.where(mr[:, :, None] == 0, fill, xr), axis=1)

    # --- Test 1: module's natural small shape (B=2, S=8, H=32); grid (1,1,1). ---
    B, S, H = 2, 8, 32
    x = jax.random.normal(k1, (B, S, H), dtype=jnp.float32)
    lengths = jnp.array([5, 8], dtype=jnp.int32)
    attention_mask = (jnp.arange(S)[None, :] < lengths[:, None]).astype(jnp.int32)
    input_ids = jnp.zeros((B, S), dtype=jnp.int32)   # unused by the forward pass
    out = jax.block_until_ready(min_pooling(x, attention_mask, input_ids, None))
    assert out.shape == (B, H)
    assert jnp.allclose(out, reference(x, attention_mask), atol=1e-6, rtol=1e-6)

    # --- Test 2: tiled path — forced small byte budget gives TH=128 (two parallel
    #     H blocks for the 2-TC split), TS=32 with a partial S tail (S=72), grid
    #     (1, 2, 3); includes a fully-masked row (length 0). ---
    B2, S2, H2 = 8, 72, 256
    x2 = jax.random.normal(k2, (B2, S2, H2), dtype=jnp.float32)
    lengths2 = jnp.array([72, 0, 17, 40, 72, 1, 33, 8], dtype=jnp.int32)
    mask2 = (jnp.arange(S2)[None, :] < lengths2[:, None]).astype(jnp.int32)
    out2 = jax.block_until_ready(
        min_pooling(x2, mask2, x_block_bytes=8 * 32 * 128 * 4)
    )
    assert out2.shape == (B2, H2)
    assert jnp.allclose(out2, reference(x2, mask2), atol=1e-6, rtol=1e-6)

    # --- Test 3: bf16 path (dtype-aware sublane quantum 16 -> TB=16). ---
    B3, S3, H3 = 16, 48, 128
    x3 = jax.random.normal(k3, (B3, S3, H3), dtype=jnp.float32).astype(jnp.bfloat16)
    lengths3 = jnp.concatenate(
        [jnp.arange(1, 9), jnp.full((8,), S3)]).astype(jnp.int32)
    mask3 = (jnp.arange(S3)[None, :] < lengths3[:, None]).astype(jnp.int32)
    out3 = jax.block_until_ready(min_pooling(x3, mask3))
    assert out3.shape == (B3, H3)
    assert jnp.allclose(out3.astype(jnp.float32),
                        reference(x3, mask3).astype(jnp.float32),
                        atol=1e-2, rtol=1e-2)

    print("KERNEL_OK")
</pallas_src>

<mosaic_0001>
module attributes {stable_mosaic.version = 11 : i64} {
  func.func @_min_pool_kernel(%arg0: i32, %arg1: i32, %arg2: i32, %arg3: memref<2x8x32xf32, #tpu.memory_space<vmem>>, %arg4: memref<2x8x1xi8, #tpu.memory_space<vmem>>, %arg5: memref<2x32xf32, #tpu.memory_space<vmem>>) attributes {dimension_semantics = [#tpu.dimension_semantics<parallel>, #tpu.dimension_semantics<parallel>, #tpu.dimension_semantics<arbitrary>], iteration_bounds = array<i64: 1, 1, 1>, scalar_prefetch = 0 : i64, scratch_operands = 0 : i64, tpu.core_type = #tpu.core_type<tc>, window_params = [{transform_indices = @transform_0, window_bounds = array<i64: 2, 8, 32>}, {transform_indices = @transform_1, window_bounds = array<i64: 2, 8, 1>}, {transform_indices = @transform_2, window_bounds = array<i64: 2, 32>}]} {
    %c0 = arith.constant 0 : index
    %c0_0 = arith.constant 0 : index
    %c0_1 = arith.constant 0 : index
    %0 = vector.load %arg3[%c0, %c0_0, %c0_1] : memref<2x8x32xf32, #tpu.memory_space<vmem>>, vector<2x8x32xf32>
    %c0_2 = arith.constant 0 : index
    %c0_3 = arith.constant 0 : index
    %c0_4 = arith.constant 0 : index
    %1 = vector.load %arg4[%c0_2, %c0_3, %c0_4] : memref<2x8x1xi8, #tpu.memory_space<vmem>>, vector<2x8x1xi8>
    %c0_i8 = arith.constant 0 : i8
    %2 = vector.broadcast %c0_i8 : i8 to vector<2x8x1xi8>
    %3 = arith.cmpi ne, %1, %2 : vector<2x8x1xi8>
    %cst = arith.constant 9.99999974E-5 : f32
    %4 = vector.shape_cast %3 : vector<2x8x1xi1> to vector<2x8x1xi1>
    %5 = vector.broadcast %4 : vector<2x8x1xi1> to vector<2x8x32xi1>
    %6 = vector.broadcast %cst : f32 to vector<2x8x32xf32>
    %7 = arith.select %5, %0, %6 : vector<2x8x32xi1>, vector<2x8x32xf32>
    %cst_5 = arith.constant dense<0x7F800000> : vector<2x32xf32>
    %8 = vector.multi_reduction <minimumf>, %7, %cst_5 [1] : vector<2x8x32xf32> to vector<2x32xf32>
    %c0_i32 = arith.constant 0 : i32
    %9 = arith.cmpi eq, %arg2, %c0_i32 : i32
    %10 = arith.extui %9 : i1 to i32
    %c0_i32_6 = arith.constant 0 : i32
    %11 = arith.cmpi ne, %10, %c0_i32_6 : i32
    scf.if %11 {
      %c0_9 = arith.constant 0 : index
      %c0_10 = arith.constant 0 : index
      %15 = vector.load %arg5[%c0_9, %c0_10] : memref<2x32xf32, #tpu.memory_space<vmem>>, vector<2x32xf32>
      tpu.vector_store %arg5[%c0_9, %c0_10], %8 {strides = array<i32>} : memref<2x32xf32, #tpu.memory_space<vmem>>, vector<2x32xf32>,
    } else {
    }
    %c0_i32_7 = arith.constant 0 : i32
    %12 = arith.cmpi sgt, %arg2, %c0_i32_7 : i32
    %13 = arith.extui %12 : i1 to i32
    %c0_i32_8 = arith.constant 0 : i32
    %14 = arith.cmpi ne, %13, %c0_i32_8 : i32
    scf.if %14 {
      %c0_9 = arith.constant 0 : index
      %c0_10 = arith.constant 0 : index
      %15 = vector.load %arg5[%c0_9, %c0_10] : memref<2x32xf32, #tpu.memory_space<vmem>>, vector<2x32xf32>
      %16 = arith.minimumf %15, %8 : vector<2x32xf32>
      %c0_11 = arith.constant 0 : index
      %c0_12 = arith.constant 0 : index
      %17 = vector.load %arg5[%c0_11, %c0_12] : memref<2x32xf32, #tpu.memory_space<vmem>>, vector<2x32xf32>
      tpu.vector_store %arg5[%c0_11, %c0_12], %16 {strides = array<i32>} : memref<2x32xf32, #tpu.memory_space<vmem>>, vector<2x32xf32>,
    } else {
    }
    return
  }
  func.func @transform_0(%arg0: i32, %arg1: i32, %arg2: i32) -> (i32, i32, i32) {
    %c0_i32 = arith.constant 0 : i32
    return %arg0, %arg2, %arg1 : i32, i32, i32
  }
  func.func @transform_1(%arg0: i32, %arg1: i32, %arg2: i32) -> (i32, i32, i32) {
    %c0_i32 = arith.constant 0 : i32
    %c0_i32_0 = arith.constant 0 : i32
    return %arg0, %arg2, %c0_i32 : i32, i32, i32
  }
  func.func @transform_2(%arg0: i32, %arg1: i32, %arg2: i32) -> (i32, i32) {
    %c0_i32 = arith.constant 0 : i32
    return %arg0, %arg1 : i32, i32
  }
}

</mosaic_0001>

<llo_original>
// kernel: tpu_custom_call.1
$region0: #{tpu_custom_call.1}
  #allocation0 [shape = 'u32[]', space=smem, size = 0x4, offset = 0x4, fixed_abs, tag = 'smem constant byte address 0x4 - core index']
  #allocation1 [shape = 'u32[144,128]{1,0:T(1,128)}', space=vmem, size = 0x12000, scoped, tag = 'internal scratch']
  %s0 = inlined_call_operand.hbm [shape: f32[2,8,32], index: 0, kind: input, shape index: {}]
  %s1 = inlined_call_operand.vmem [shape: s8[2,8,1], index: 1, kind: input, shape index: {}]
  %s2 = inlined_call_operand.hbm [shape: f32[2,32], index: 2, kind: output, shape index: {}]
  %s3 = sld [smem:[#allocation0]]
  $region30: #{tpu_custom_call.1} parent=0
    _
  %s5 = ssub.s32 1, %s3
  %s6 = scalar_select 0, %s5, %s3
  $region1: #{tpu_custom_call.1} parent=0
    #allocation2 [shape = 'u8[8192]{0}', space=vmem, size = 0x2000, scoped, tag = 'input window, operand 0, single buffered']
    #allocation3 [shape = 's32[1]{0}', space=sflag, size = 0x4, scoped, tag = 'scoped memory for tpu_custom_call.1']
    #allocation4 [shape = 's32[1]{0}', space=sflag, size = 0x4, scoped, tag = 'scoped memory for tpu_custom_call.1']
    #allocation5 [shape = 'u8[1024]{0}', space=vmem, size = 0x400, scoped, tag = 'output window, operand 0, single buffered']
    %7 = vsyncpa [#allocation3], 0
    %8 = vsyncpa [#allocation4], 0
    // Predicated region
    $region2: #{tpu_custom_call.1} parent=1 // pred_check
      _
    $region3: #{tpu_custom_call.1} parent=1 // pred_check_branch
      %10 = sbr.rel (0) target = $region5
    $region4: #{tpu_custom_call.1} parent=1 // pred_region
      %s12 = ssub.s32 256, 256
      %13 = vsyncadd [#allocation3], %s12
      %s14 = sshll.u32 [#allocation2], 4
      %s15 = int_to_ptr.vmem [resolvable:$true] %s14
      %20 = dma.hbm_to_vmem [thread:$0]  %s0, 256, %s15, [#allocation3], 128, 128, 8
    $region5: #{tpu_custom_call.1} parent=1 // pred_fallthru
      _
    // Predicated region
    $region6: #{tpu_custom_call.1} parent=1 // pred_check
      _
    $region7: #{tpu_custom_call.1} parent=1 // pred_check_branch
      %22 = sbr.rel (0) target = $region9
    $region8: #{tpu_custom_call.1} parent=1 // pred_region
      _
    $region9: #{tpu_custom_call.1} parent=1 // pred_fallthru
      _
    // Predicated region
    $region10: #{tpu_custom_call.1} parent=1 // pred_check
      _
    $region11: #{tpu_custom_call.1} parent=1 // pred_check_branch
      %24 = sbr.rel (0) target = $region13
    $region12: #{tpu_custom_call.1} parent=1 // pred_region
      %25 = dma.done [#allocation3], 256
    $region13: #{tpu_custom_call.1} parent=1 // pred_fallthru
      _
    %v28 = vld [vmem:[#allocation2] sm:$0xff]
    %v29 = vld [vmem:[#allocation2 + $0x8] sm:$0xff]
    %v30 = vld [vmem:[%s1] sm:$0x3]
    %v31 = vld [vmem:[%s1 + $0x2] sm:$0x3]
    %vm32 = vnez %v30
    %vm33 = vnez %v31
    %v34 = vsel %vm32, 16843009, 0
    %v35 = vsel %vm33, 16843009, 0
    %v36 = vunpack.c.0.s8 %v34
    %v37 = vunpack.c.0.s8 %v35
    %vm38 = vcmp.ne.s32.totalorder %v36, 0
    %vm39 = vcmp.ne.s32.totalorder %v37, 0
    %v40 = vsel %vm38, 1, 0
    %v41 = vsel %vm39, 1, 0
    %42 = vset.pattern.permute.xlu0 0
    %43 = vperm.xlu0 %42, %v40
    %v44 = vpop.permute.xlu0 %43
    %45 = vset.pattern.permute.xlu0 0
    %46 = vperm.xlu0 %45, %v41
    %v47 = vpop.permute.xlu0 %46
    %vm48 = vcmp.eq.s32.totalorder %v44, 1
    %vm49 = vcmp.eq.s32.totalorder %v47, 1
    %v50 = vsel %vm48, %v28, 0.0001
    %v51 = vsel %vm49, %v29, 0.0001
    %vm52 = vcmask 261120
    %v53 = vsel %vm52, %v50, inf
    %v54 = vrot.slane %v53, 4
    %v55 = vmin.f32 %v53, %v54
    %v56 = vrot.slane %v55, 2
    %v57 = vmin.f32 %v55, %v56
    %v58 = vrot.slane %v57, 1
    %v59 = vmin.f32 %v57, %v58
    %v60 = vsel %vm52, %v51, inf
    %v61 = vrot.slane %v60, 4
    %v62 = vmin.f32 %v60, %v61
    %v63 = vrot.slane %v62, 2
    %v64 = vmin.f32 %v62, %v63
    %v65 = vrot.slane %v64, 1
    %v66 = vmin.f32 %v64, %v65
    %p67 = scmp.eq.s32.totalorder 0, 0
    // Predicated region
    $region14: #{tpu_custom_call.1} parent=1 // pred_check
      %p68 = pneg %p67
    $region15: #{tpu_custom_call.1} parent=1 // pred_check_branch
      %70 = sbr.rel (%p68) target = $region17
    $region16: #{tpu_custom_call.1} parent=1 // pred_region
      %vm73 = vcmask 1041409
      %v74 = vsel %vm73, %v66, %v59
      %vm76 = vcmask 254976
      %77 = vst.msk [vmem:[#allocation5] sm:$0x3] %vm76, %v74
    $region17: #{tpu_custom_call.1} parent=1 // pred_fallthru
      _
    %p78 = scmp.gt.s32.totalorder 0, 0
    // Predicated region
    $region18: #{tpu_custom_call.1} parent=1 // pred_check
      %p79 = pneg %p78
    $region19: #{tpu_custom_call.1} parent=1 // pred_check_branch
      %81 = sbr.rel (%p79) target = $region21
    $region20: #{tpu_custom_call.1} parent=1 // pred_region
      %v82 = vld [vmem:[#allocation5] sm:$0x3]
      %vm85 = vcmask 1041409
      %v86 = vsel %vm85, %v66, %v59
      %v88 = vmin.f32 %v82, %v86
      %vm89 = vcmask 254976
      %90 = vst.msk [vmem:[#allocation5] sm:$0x3] %vm89, %v88
    $region21: #{tpu_custom_call.1} parent=1 // pred_fallthru
      _
    // Predicated region
    $region22: #{tpu_custom_call.1} parent=1 // pred_check
      _
    $region23: #{tpu_custom_call.1} parent=1 // pred_check_branch
      %92 = sbr.rel (0) target = $region25
    $region24: #{tpu_custom_call.1} parent=1 // pred_region
      %s94 = ssub.s32 32, 32
      %95 = vsyncadd [#allocation4], %s94
      %s97 = sshll.u32 [#allocation5], 4
      %s98 = int_to_ptr.vmem [resolvable:$true] %s97
      %100 = dma.vmem_to_hbm [thread:$0]  %s98, 32, %s2, [#allocation4]
    $region25: #{tpu_custom_call.1} parent=1 // pred_fallthru
      _
    // Predicated region
    $region26: #{tpu_custom_call.1} parent=1 // pred_check
      _
    $region27: #{tpu_custom_call.1} parent=1 // pred_check_branch
      %102 = sbr.rel (0) target = $region29
    $region28: #{tpu_custom_call.1} parent=1 // pred_region
      %103 = dma.done [#allocation4], 32
    $region29: #{tpu_custom_call.1} parent=1 // pred_fallthru
      _
    %104 = vsyncpa [#allocation3], 1
    %105 = vsyncpa [#allocation4], 1

</llo_original>
